<compile_context>
chip_gen: v7x
topology: tpu7x:2x2x1
jax: 0.10.0
libtpu: 0.0.40
codegen_flags: <defaults>
</compile_context>

<pallas_src>
import functools
import math

import jax
import jax.numpy as jnp
from jax.experimental import pallas as pl
from jax.experimental.pallas import tpu as pltpu

_LANES = 128


def _round_up(x, m):
    return ((x + m - 1) // m) * m


def _location_network_kernel(p_ref, act_ref, o_ref, *,
                             in_size, hid_size, out_size, std):
    """One grid step == one independent LocationNetwork.forward (batch 1).

    p_ref (hid padded to 8 + 1 rows, 128 lanes), f32:
      rows [0, hid): lanes [0,in) = w1^T, lane `in` = b1 (column),
                     lanes [in+1, in+1+out) = w2
      row  hid     : lanes [in+1, in+1+out) = b2 (aligned with the w2 lanes)
    act_ref block (1, 1, 128): lanes [0,in) = x, lane `in` = 1.0 (bias term),
      lanes [in+1, in+1+out) = eps, rest 0.
    o_ref block (1, 1, 128): lanes [in+1, in+1+out) = l_t, every other lane =
      log_pi (broadcast), giving a single unmasked full-width store.
    """
    act = act_ref[0]                                            # (1, 128)
    lane = jax.lax.broadcasted_iota(jnp.int32, (1, _LANES), 1)

    w_rows = p_ref[0:hid_size, :]                               # (hid, 128)
    b2_row = p_ref[hid_size:hid_size + 1, :]                    # (1, 128)

    # fc: x @ w1 + b1 as a full-width VPU multiply + XLU lane reduction.
    # The 1.0 at lane `in` folds the bias in; eps/padding lanes are masked out.
    x_masked = jnp.where(lane <= in_size, act, 0.0)             # (1, 128)
    feat = jnp.sum(w_rows * x_masked, axis=1, keepdims=True)    # (hid, 1)
    # torch.div(1, feat + 1e-8); exact reciprocal (approx vrcp would risk the
    # tolerance because feat near 0 blows up 1/feat).
    feat = 1.0 / (feat + 1e-8)

    # fc_lt: tanh(feat @ w2 + b2) computed full-width via a sublane reduction;
    # only the w2 lanes [in+1, in+1+out) carry meaningful values.
    mu_wide = jnp.tanh(jnp.sum(feat * w_rows, axis=0, keepdims=True) + b2_row)

    # rsample + clamp.  eps already sits on the w2 lanes of `act`, so the
    # sample lands on those lanes with no lane shifting.
    l_t_wide = jnp.clip(mu_wide + std * act, -1.0, 1.0)         # (1, 128)

    out_lo = in_size + 1
    out_hi = out_lo + out_size
    lt_mask = (lane >= out_lo) & (lane < out_hi)

    # log_pi depends only on eps (pre-clamp sample: l_t - mu == std * eps).
    eps_wide = jnp.where(lt_mask, act, 0.0)
    const = out_size * (math.log(std) + 0.5 * math.log(2.0 * math.pi))
    log_pi = -0.5 * jnp.sum(eps_wide * eps_wide, axis=1, keepdims=True) - const

    # Single unmasked 128-lane store.
    o_ref[0] = jnp.where(lt_mask, l_t_wide, log_pi)


def pack_location_params(w1, b1, w2, b2):
    """One-time packing of fc / fc_lt weights+biases into one compact slab.

    w1: (in, hid), b1: (hid,), w2: (hid, out), b2: (out,)  [math layout x@W+b]
    Returns an f32 slab of shape (round_up(hid + 1, 8), 128).
    """
    in_size, hid_size = w1.shape
    out_size = w2.shape[1]
    assert hid_size == in_size // 2
    assert in_size + 1 + out_size <= _LANES, "single-vreg-lane layout assumed"

    rows = _round_up(hid_size + 1, 8)
    slab = jnp.zeros((rows, _LANES), jnp.float32)
    slab = slab.at[0:hid_size, 0:in_size].set(jnp.asarray(w1, jnp.float32).T)
    slab = slab.at[0:hid_size, in_size].set(jnp.asarray(b1, jnp.float32))
    slab = slab.at[0:hid_size, in_size + 1:in_size + 1 + out_size].set(
        jnp.asarray(w2, jnp.float32))
    slab = slab.at[hid_size, in_size + 1:in_size + 1 + out_size].set(
        jnp.asarray(b2, jnp.float32))
    return slab


def location_network_forward_batched(h_ts, param_slab, eps, *,
                                     input_size, output_size, std):
    """N independent LocationNetwork forwards in one pallas_call.

    h_ts: anything reshapeable to (N, input_size); eps: (N, output_size).
    Returns (log_pi (N,), l_t (N, output_size)); row i is exactly the module's
    forward applied to h_ts[i] with noise eps[i].
    """
    hid_size = input_size // 2
    n = eps.shape[0]
    used = input_size + 1 + output_size
    assert used <= _LANES

    x = h_ts.reshape(n, input_size).astype(jnp.float32)
    e = eps.reshape(n, output_size).astype(jnp.float32)
    # One dynamic input row per step: x | 1.0 (bias) | eps | zero padding.
    act = jnp.concatenate(
        [x, jnp.ones((n, 1), jnp.float32), e,
         jnp.zeros((n, _LANES - used), jnp.float32)], axis=-1)
    act = act.reshape(n, 1, _LANES)

    slab_rows = param_slab.shape[0]
    kernel = functools.partial(_location_network_kernel,
                               in_size=input_size, hid_size=hid_size,
                               out_size=output_size, std=float(std))
    cost = pl.CostEstimate(
        flops=int(n * (2 * input_size * hid_size
                       + 2 * hid_size * output_size + 4 * _LANES)),
        transcendentals=int(n * (hid_size + _LANES)),
        bytes_accessed=int(slab_rows * _LANES * 4 + n * 2 * _LANES * 4))

    out = pl.pallas_call(
        kernel,
        out_shape=jax.ShapeDtypeStruct((n, 1, _LANES), jnp.float32),
        grid=(n,),
        in_specs=[
            # Param slab: same block every step -> DMA'd once, stays resident.
            pl.BlockSpec((slab_rows, _LANES), lambda i: (0, 0)),
            pl.BlockSpec((1, 1, _LANES), lambda i: (i, 0, 0)),
        ],
        out_specs=pl.BlockSpec((1, 1, _LANES), lambda i: (i, 0, 0)),
        compiler_params=pltpu.CompilerParams(
            dimension_semantics=("parallel",)),
        cost_estimate=cost,
    )(param_slab, act)

    log_pi = out[:, 0, 0]                                            # (N,)
    l_t = out[:, 0, input_size + 1:input_size + 1 + output_size]     # (N, out)
    return log_pi, l_t


def location_network_forward(h_t, param_slab, eps, *,
                             input_size, output_size, std):
    """Module-shaped path: flatten(h_t) -> effective batch 1, like PyTorch.

    Returns (log_pi (1,), l_t (1, output_size)).
    """
    x = h_t.reshape(1, input_size)
    e = eps.reshape(1, output_size)
    log_pi, l_t = location_network_forward_batched(
        x, param_slab, e,
        input_size=input_size, output_size=output_size, std=std)
    return log_pi, l_t


def _reference_forward_batched(h, params, eps, std):
    """Pure-JAX reference (f32-exact dots) for correctness checking."""
    w1, b1, w2, b2 = params
    x = h.reshape(h.shape[0], -1).astype(jnp.float32)
    feat = jnp.dot(x, w1, precision=jax.lax.Precision.HIGHEST) + b1
    feat = 1.0 / (feat + 1e-8)
    mu = jnp.tanh(jnp.dot(feat, w2, precision=jax.lax.Precision.HIGHEST) + b2)
    l_t = mu + std * eps
    var = std * std
    log_pi = (-((l_t - mu) ** 2) / (2.0 * var)
              - math.log(std) - 0.5 * math.log(2.0 * math.pi))
    log_pi = jnp.sum(log_pi, axis=1)
    l_t = jnp.clip(l_t, -1.0, 1.0)
    return log_pi, l_t


if __name__ == "__main__":
    input_size = 32          # hidden-state size of the core network
    output_size = 2          # 2D location
    std = 0.17
    hid_size = input_size // 2

    key = jax.random.PRNGKey(0)
    k1, k2, k3, k4, k5, k6 = jax.random.split(key, 6)

    # Deterministic parameter init (same shapes / bounds as nn.Linear default).
    bound1 = 1.0 / math.sqrt(input_size)
    w1 = jax.random.uniform(k1, (input_size, hid_size), jnp.float32, -bound1, bound1)
    b1 = jax.random.uniform(k2, (hid_size,), jnp.float32, -bound1, bound1)
    bound2 = 1.0 / math.sqrt(hid_size)
    w2 = jax.random.uniform(k3, (hid_size, output_size), jnp.float32, -bound2, bound2)
    b2 = jax.random.uniform(k4, (output_size,), jnp.float32, -bound2, bound2)
    params = (w1, b1, w2, b2)

    # One-time packing of static parameters (reused across all calls).
    param_slab = pack_location_params(w1, b1, w2, b2)

    # Batched path: 8 independent glimpse steps / envs amortized in one call.
    n_steps = 8
    h_ts = jax.random.normal(k5, (n_steps, input_size), jnp.float32)
    eps = jax.random.normal(k6, (n_steps, output_size), jnp.float32)

    fwd_batched = jax.jit(functools.partial(location_network_forward_batched,
                                            input_size=input_size,
                                            output_size=output_size,
                                            std=std))
    log_pi_b, l_t_b = fwd_batched(h_ts, param_slab, eps)
    jax.block_until_ready((log_pi_b, l_t_b))

    ref_log_pi_b, ref_l_t_b = _reference_forward_batched(h_ts, params, eps, std)
    assert log_pi_b.shape == (n_steps,) and l_t_b.shape == (n_steps, output_size)
    assert jnp.allclose(log_pi_b, ref_log_pi_b, atol=1e-3, rtol=1e-3)
    assert jnp.allclose(l_t_b, ref_l_t_b, atol=1e-3, rtol=1e-3)

    # Module-shaped single-step path (effective batch 1, like the PyTorch forward).
    fwd_single = jax.jit(functools.partial(location_network_forward,
                                           input_size=input_size,
                                           output_size=output_size,
                                           std=std))
    log_pi, l_t = fwd_single(h_ts[0], param_slab, eps[0])
    jax.block_until_ready((log_pi, l_t))
    assert log_pi.shape == (1,) and l_t.shape == (1, output_size)
    assert jnp.allclose(log_pi, ref_log_pi_b[0:1], atol=1e-3, rtol=1e-3)
    assert jnp.allclose(l_t, ref_l_t_b[0:1], atol=1e-3, rtol=1e-3)

    print("KERNEL_OK")
</pallas_src>

<mosaic_0001>
module attributes {stable_mosaic.version = 11 : i64} {
  func.func @_location_network_kernel(%arg0: i32, %arg1: memref<24x128xf32, #tpu.memory_space<vmem>>, %arg2: memref<1x1x128xf32, #tpu.memory_space<vmem>>, %arg3: memref<1x1x128xf32, #tpu.memory_space<vmem>>) attributes {dimension_semantics = [#tpu.dimension_semantics<parallel>], iteration_bounds = array<i64: 8>, scalar_prefetch = 0 : i64, scratch_operands = 0 : i64, tpu.core_type = #tpu.core_type<tc>, window_params = [{pipeline_mode = #tpu.pipeline_mode<synchronous>, transform_indices = @transform_0, window_bounds = array<i64: 24, 128>}, {transform_indices = @transform_1, window_bounds = array<i64: 1, 1, 128>}, {transform_indices = @transform_2, window_bounds = array<i64: 1, 1, 128>}]} {
    %c0 = arith.constant 0 : index
    %c0_0 = arith.constant 0 : index
    %c0_1 = arith.constant 0 : index
    %0 = vector.load %arg2[%c0, %c0_0, %c0_1] : memref<1x1x128xf32, #tpu.memory_space<vmem>>, vector<1x1x128xf32>
    %1 = vector.shape_cast %0 : vector<1x1x128xf32> to vector<1x128xf32>
    %2 = tpu.iota {dimensions = array<i32: 1>} : vector<1x128xi32>
    %c0_2 = arith.constant 0 : index
    %c0_3 = arith.constant 0 : index
    %3 = vector.load %arg1[%c0_2, %c0_3] : memref<24x128xf32, #tpu.memory_space<vmem>>, vector<16x128xf32>
    %c16 = arith.constant 16 : index
    %c0_4 = arith.constant 0 : index
    %4 = vector.load %arg1[%c16, %c0_4] : memref<24x128xf32, #tpu.memory_space<vmem>>, vector<1x128xf32>
    %c32_i32 = arith.constant 32 : i32
    %5 = vector.broadcast %c32_i32 : i32 to vector<1x128xi32>
    %6 = arith.cmpi sle, %2, %5 : vector<1x128xi32>
    %cst = arith.constant 0.000000e+00 : f32
    %7 = vector.broadcast %cst : f32 to vector<1x128xf32>
    %8 = arith.select %6, %1, %7 : vector<1x128xi1>, vector<1x128xf32>
    %9 = vector.broadcast %8 : vector<1x128xf32> to vector<16x128xf32>
    %10 = arith.mulf %3, %9 : vector<16x128xf32>
    %cst_5 = arith.constant dense<0.000000e+00> : vector<16xf32>
    %11 = vector.multi_reduction <add>, %10, %cst_5 [1] : vector<16x128xf32> to vector<16xf32>
    %12 = vector.shape_cast %11 : vector<16xf32> to vector<16x1xf32>
    %cst_6 = arith.constant 9.99999993E-9 : f32
    %13 = vector.broadcast %cst_6 : f32 to vector<16x1xf32>
    %14 = arith.addf %12, %13 : vector<16x1xf32>
    %cst_7 = arith.constant 1.000000e+00 : f32
    %15 = vector.broadcast %cst_7 : f32 to vector<16x1xf32>
    %16 = arith.divf %15, %14 : vector<16x1xf32>
    %17 = vector.broadcast %16 : vector<16x1xf32> to vector<16x128xf32>
    %18 = arith.mulf %17, %3 : vector<16x128xf32>
    %cst_8 = arith.constant dense<0.000000e+00> : vector<128xf32>
    %19 = vector.multi_reduction <add>, %18, %cst_8 [0] : vector<16x128xf32> to vector<128xf32>
    %20 = vector.shape_cast %19 : vector<128xf32> to vector<1x128xf32>
    %21 = arith.addf %20, %4 : vector<1x128xf32>
    %22 = math.tanh %21 : vector<1x128xf32>
    %cst_9 = arith.constant 1.700000e-01 : f32
    %23 = vector.broadcast %cst_9 : f32 to vector<1x128xf32>
    %24 = arith.mulf %23, %1 : vector<1x128xf32>
    %25 = arith.addf %22, %24 : vector<1x128xf32>
    %cst_10 = arith.constant -1.000000e+00 : f32
    %cst_11 = arith.constant 1.000000e+00 : f32
    %26 = vector.broadcast %cst_10 : f32 to vector<1x128xf32>
    %27 = arith.maximumf %26, %25 : vector<1x128xf32>
    %28 = vector.broadcast %cst_11 : f32 to vector<1x128xf32>
    %29 = arith.minimumf %28, %27 : vector<1x128xf32>
    %c33_i32 = arith.constant 33 : i32
    %30 = vector.broadcast %c33_i32 : i32 to vector<1x128xi32>
    %31 = arith.cmpi sge, %2, %30 : vector<1x128xi32>
    %c35_i32 = arith.constant 35 : i32
    %32 = vector.broadcast %c35_i32 : i32 to vector<1x128xi32>
    %33 = arith.cmpi slt, %2, %32 : vector<1x128xi32>
    %34 = arith.andi %31, %33 : vector<1x128xi1>
    %cst_12 = arith.constant 0.000000e+00 : f32
    %35 = vector.broadcast %cst_12 : f32 to vector<1x128xf32>
    %36 = arith.select %34, %1, %35 : vector<1x128xi1>, vector<1x128xf32>
    %37 = arith.mulf %36, %36 : vector<1x128xf32>
    %cst_13 = arith.constant dense<0.000000e+00> : vector<1xf32>
    %38 = vector.multi_reduction <add>, %37, %cst_13 [1] : vector<1x128xf32> to vector<1xf32>
    %39 = vector.shape_cast %38 : vector<1xf32> to vector<1x1xf32>
    %cst_14 = arith.constant -5.000000e-01 : f32
    %40 = vector.broadcast %cst_14 : f32 to vector<1x1xf32>
    %41 = arith.mulf %40, %39 : vector<1x1xf32>
    %cst_15 = arith.constant -1.70603657 : f32
    %42 = vector.broadcast %cst_15 : f32 to vector<1x1xf32>
    %43 = arith.subf %41, %42 : vector<1x1xf32>
    %44 = vector.shape_cast %43 : vector<1x1xf32> to vector<1x1xf32>
    %45 = vector.broadcast %44 : vector<1x1xf32> to vector<1x128xf32>
    %46 = arith.select %34, %29, %45 : vector<1x128xi1>, vector<1x128xf32>
    %c0_16 = arith.constant 0 : index
    %c0_17 = arith.constant 0 : index
    %c0_18 = arith.constant 0 : index
    %47 = vector.load %arg3[%c0_16, %c0_17, %c0_18] : memref<1x1x128xf32, #tpu.memory_space<vmem>>, vector<1x1x128xf32>
    %48 = vector.shape_cast %47 : vector<1x1x128xf32> to vector<1x128xf32>
    %49 = vector.shape_cast %46 : vector<1x128xf32> to vector<1x1x128xf32>
    tpu.vector_store %arg3[%c0_16, %c0_17, %c0_18], %49 {strides = array<i32>} : memref<1x1x128xf32, #tpu.memory_space<vmem>>, vector<1x1x128xf32>,
    return
  }
  func.func @transform_0(%arg0: i32) -> (i32, i32) {
    %c0_i32 = arith.constant 0 : i32
    %c0_i32_0 = arith.constant 0 : i32
    %c0_i32_1 = arith.constant 0 : i32
    return %c0_i32, %c0_i32_0 : i32, i32
  }
  func.func @transform_1(%arg0: i32) -> (i32, i32, i32) {
    %c0_i32 = arith.constant 0 : i32
    %c0_i32_0 = arith.constant 0 : i32
    %c0_i32_1 = arith.constant 0 : i32
    return %arg0, %c0_i32, %c0_i32_0 : i32, i32, i32
  }
  func.func @transform_2(%arg0: i32) -> (i32, i32, i32) {
    %c0_i32 = arith.constant 0 : i32
    %c0_i32_0 = arith.constant 0 : i32
    %c0_i32_1 = arith.constant 0 : i32
    return %arg0, %c0_i32, %c0_i32_0 : i32, i32, i32
  }
}

</mosaic_0001>

<llo_original>
// kernel: location_network_forward_batched.1
$region0: #{location_network_forward_batched.1}
  #allocation0 [shape = 'u32[]', space=smem, size = 0x4, offset = 0x4, fixed_abs, tag = 'smem constant byte address 0x4 - core index']
  #allocation1 [shape = 'u32[144,128]{1,0:T(1,128)}', space=vmem, size = 0x12000, scoped, tag = 'internal scratch']
  %s0 = inlined_call_operand.vmem [shape: f32[24,128], index: 0, kind: input, shape index: {}]
  %s1 = inlined_call_operand.vmem [shape: f32[8,1,128], index: 1, kind: input, shape index: {}]
  %s2 = inlined_call_operand.vmem [shape: f32[8,1,128], index: 2, kind: output, shape index: {}]
  %s3 = sld [smem:[#allocation0]]
  $region41: #{location_network_forward_batched.1} parent=0
    _
  %s5 = ssub.s32 1, %s3
  %s6 = scalar_select 0, %s5, %s3
  loop: start=0, step=1, limit=10
  $region2: #{location_network_forward_batched.1} parent=0 // loop_pre_header
    _
  $region3: #{location_network_forward_batched.1} parent=0 // loop_header
    %s8 = sphi 0, %s12
    %p9 = scmp.ge.s32.totalorder %s8, 10
    %s16 = sphi 0, %s16
    %s18 = sphi 0, %s16
    %s19 = sphi 0, %s18
    %s33 = sphi 0, %s19
    %s39 = sphi 0, %s41
    %s42 = sphi 0, %s39
    %s43 = sphi 0, %s42
    %s59 = sphi 0, %s43
    %s65 = sphi 0, %s67
    %s68 = sphi 0, %s65
    %s69 = sphi 0, %s68
    %s85 = sphi 0, %s69
  $region4: #{location_network_forward_batched.1} parent=0 // loop_header_branch
    %11 = sbr.rel (%p9) target = $region8
  $region5: #{location_network_forward_batched.1} parent=0 // loop_body
    %s13 = ssub.s32 %s8, 1
    %s14 = ssub.s32 %s8, 2
    %s15 = sadd.s32 %s8, 1
    %s17 = sadd.s32 %s16, 1
    %p20 = scmp.eq.s32.totalorder %s8, 7
    %p21 = scmp.ne.s32.totalorder %s16, %s18
    %p22 = scmp.eq.s32.totalorder %s8, 0
    %p23 = por %p21, %p22
    %p24 = scmp.ne.s32.totalorder %s16, %s18
    %p25 = scmp.eq.s32.totalorder %s13, 7
    %p26 = por %p24, %p25
    %p27 = scmp.ne.s32.totalorder %s18, %s19
    %p28 = scmp.eq.s32.totalorder %s13, 0
    %p29 = por %p27, %p28
    %p30 = scmp.ne.s32.totalorder %s18, %s19
    %p31 = scmp.eq.s32.totalorder %s14, 7
    %p32 = por %p30, %p31
    %p34 = scmp.ne.s32.totalorder %s19, %s33
    %p35 = scmp.eq.s32.totalorder %s14, 0
    %p36 = por %p34, %p35
    %s37 = ssub.s32 %s8, %s15
    %p38 = scmp.eq.s32.totalorder %s37, 0
    %s40 = sadd.s32 %s39, 1
    %s41 = scalar_select %p38, %s39, %s40
    %p44 = pneg %p38
    %p45 = scmp.eq.s32.totalorder %s8, 7
    %p46 = por %p44, %p45
    %p47 = scmp.ne.s32.totalorder %s39, %s42
    %p48 = scmp.eq.s32.totalorder %s8, 0
    %p49 = por %p47, %p48
    %p50 = scmp.ne.s32.totalorder %s39, %s42
    %p51 = scmp.eq.s32.totalorder %s13, 7
    %p52 = por %p50, %p51
    %p53 = scmp.ne.s32.totalorder %s42, %s43
    %p54 = scmp.eq.s32.totalorder %s13, 0
    %p55 = por %p53, %p54
    %p56 = scmp.ne.s32.totalorder %s42, %s43
    %p57 = scmp.eq.s32.totalorder %s14, 7
    %p58 = por %p56, %p57
    %p60 = scmp.ne.s32.totalorder %s43, %s59
    %p61 = scmp.eq.s32.totalorder %s14, 0
    %p62 = por %p60, %p61
    %s63 = ssub.s32 %s8, %s15
    %p64 = scmp.eq.s32.totalorder %s63, 0
    %s66 = sadd.s32 %s65, 1
    %s67 = scalar_select %p64, %s65, %s66
    %p70 = pneg %p64
    %p71 = scmp.eq.s32.totalorder %s8, 7
    %p72 = por %p70, %p71
    %p73 = scmp.ne.s32.totalorder %s65, %s68
    %p74 = scmp.eq.s32.totalorder %s8, 0
    %p75 = por %p73, %p74
    %p76 = scmp.ne.s32.totalorder %s65, %s68
    %p77 = scmp.eq.s32.totalorder %s13, 7
    %p78 = por %p76, %p77
    %p79 = scmp.ne.s32.totalorder %s68, %s69
    %p80 = scmp.eq.s32.totalorder %s13, 0
    %p81 = por %p79, %p80
    %p82 = scmp.ne.s32.totalorder %s68, %s69
    %p83 = scmp.eq.s32.totalorder %s14, 7
    %p84 = por %p82, %p83
    %p86 = scmp.ne.s32.totalorder %s69, %s85
    %p87 = scmp.eq.s32.totalorder %s14, 0
    %p88 = por %p86, %p87
    %p89 = scmp.le.s32.totalorder 1, %s8
    %p90 = scmp.lt.s32.totalorder %s8, 9
    %p91 = pnand %p89, %p90
    %p92 = pneg %p91
    // Predicated region
    $region9: #{location_network_forward_batched.1} parent=5 // pred_check
      _
    $region10: #{location_network_forward_batched.1} parent=5 // pred_check_branch
      %94 = sbr.rel (%p91) target = $region12
    $region11: #{location_network_forward_batched.1} parent=5 // pred_region
      %s95 = ssub.s32 %s8, 1
      // Predicated region
      $region13: #{location_network_forward_batched.1} parent=11 // pred_check
        %p96 = pneg %p29
      $region14: #{location_network_forward_batched.1} parent=11 // pred_check_branch
        %98 = sbr.rel (%p96) target = $region16
      $region15: #{location_network_forward_batched.1} parent=11 // pred_region
        _
      $region16: #{location_network_forward_batched.1} parent=11 // pred_fallthru
        _
    $region12: #{location_network_forward_batched.1} parent=5 // pred_fallthru
      _
    %p99 = scmp.lt.s32.totalorder %s8, 8
    // Predicated region
    $region17: #{location_network_forward_batched.1} parent=5 // pred_check
      %p100 = pneg %p99
    $region18: #{location_network_forward_batched.1} parent=5 // pred_check_branch
      %102 = sbr.rel (%p100) target = $region20
    $region19: #{location_network_forward_batched.1} parent=5 // pred_region
      // Predicated region
      $region21: #{location_network_forward_batched.1} parent=19 // pred_check
        %p103 = pneg %p49
      $region22: #{location_network_forward_batched.1} parent=19 // pred_check_branch
        %105 = sbr.rel (%p103) target = $region24
      $region23: #{location_network_forward_batched.1} parent=19 // pred_region
        %p106 = scmp.lt.s32.totalorder %s8, 7
        %s107 = scalar_select %p106, %s8, 7
        %s108 = scalar_lea.vmem %s1, %s107
      $region24: #{location_network_forward_batched.1} parent=19 // pred_fallthru
        _
    $region20: #{location_network_forward_batched.1} parent=5 // pred_fallthru
      _
    %p109 = scmp.le.s32.totalorder 1, %s8
    %p110 = scmp.lt.s32.totalorder %s8, 9
    %p111 = pnand %p109, %p110
    %p112 = pneg %p111
    // Predicated region
    $region25: #{location_network_forward_batched.1} parent=5 // pred_check
      _
    $region26: #{location_network_forward_batched.1} parent=5 // pred_check_branch
      %114 = sbr.rel (%p111) target = $region28
    $region27: #{location_network_forward_batched.1} parent=5 // pred_region
      %s115 = ssub.s32 %s8, 1
      %p116 = pneg %p29
      %p117 = pneg %p26
      %p118 = scmp.lt.s32.totalorder %s13, 7
      %s119 = scalar_select %p118, %s13, 7
      %s120 = scalar_lea.vmem %s1, %s119
      %p121 = pneg %p55
      %p122 = pneg %p52
      %p123 = pneg %p81
      %p124 = pneg %p78
      %p125 = scmp.lt.s32.totalorder %s13, 7
      %s126 = scalar_select %p125, %s13, 7
      %s127 = scalar_lea.vmem %s2, %s126
      %p128 = scmp.lt.s32.totalorder %s13, 7
      %s129 = scalar_select %p128, %s13, 7
      %s130 = scalar_lea.vmem %s1, %s129
      %p131 = scmp.lt.s32.totalorder %s13, 7
      %s132 = scalar_select %p131, %s13, 7
      %s133 = scalar_lea.vmem %s2, %s132
      %v134 = vld [vmem:[%s130] sm:$0x1]
      %v135 = vlaneseq
      %v136 = vand.u32 %v135, 127
      %v137 = vld [vmem:[%s0] sm:$0xff]
      %v138 = vld [vmem:[%s0 + $0x8] sm:$0xff]
      %v139 = vld [vmem:[%s0 + $0x10] sm:$0x1]
      %vm140 = vcmp.le.s32.totalorder %v136, 32
      %v141 = vsel %vm140, %v134, 0.0
      %v142 = vlaneseq
      %v143 = vshrl.u32 %v142, 7
      %v144 = vsub.s32 0, %v143
      %v145 = vrot.slane %v141, %v144
      %v146 = vmul.f32 %v137, %v145
      %v147 = vmul.f32 %v138, %v145
      %148 = vadd.xlane.f32.xlu0 %v146
      %v149 = vpop.xlane.xlu0 %148
      %150 = vadd.xlane.f32.xlu0 %v147
      %v151 = vpop.xlane.xlu0 %150
      %v152 = vadd.f32 %v149, 1e-08
      %v153 = vadd.f32 %v151, 1e-08
      %v154 = vrcp.pop %v152
      %v155 = vmul.f32 1.0, %v154
      %v156 = vrcp.pop %v153
      %v157 = vmul.f32 1.0, %v156
      %v158 = vmul.f32 %v155, %v137
      %v159 = vmul.f32 %v157, %v138
      %v160 = vadd.f32 %v158, %v159
      %v161 = vrot.slane %v160, 4
      %v162 = vadd.f32 %v160, %v161
      %v163 = vrot.slane %v162, 2
      %v164 = vadd.f32 %v162, %v163
      %v165 = vrot.slane %v164, 1
      %v166 = vadd.f32 %v164, %v165
      %v167 = vadd.f32 %v166, %v139
      %v168 = vtanh.pop %v167
      %v169 = vmul.f32 %v134, 0.17
      %v170 = vadd.f32 %v168, %v169
      %v171 = vmax.f32 %v170, -1.0
      %v172 = vmin.f32 %v171, 1.0
      %vm173 = vcmp.ge.s32.totalorder %v136, 33
      %vm174 = vcmp.lt.s32.totalorder %v136, 35
      %vm175 = vmand %vm173, %vm174
      %v176 = vsel %vm175, %v134, 0.0
      %v177 = vmul.f32 %v176, %v176
      %vm178 = vcmask 1040384
      %v179 = vsel %vm178, %v177, 0.0
      %180 = vadd.xlane.f32.xlu0 %v179
      %v181 = vpop.xlane.xlu0 %180
      %v182 = vmul.f32 %v181, -0.5
      %v183 = vsub.f32 %v182, -1.7060366
      %v184 = vsel %vm175, %v172, %v183
      %185 = vst [vmem:[%s133] sm:$0x1] %v184
      %p186 = scmp.lt.s32.totalorder %s13, 7
      %s187 = scalar_select %p186, %s13, 7
      %s188 = scalar_lea.vmem %s2, %s187
      // Predicated region
      $region29: #{location_network_forward_batched.1} parent=27 // pred_check
        %p189 = pneg %p78
      $region30: #{location_network_forward_batched.1} parent=27 // pred_check_branch
        %191 = sbr.rel (%p189) target = $region32
      $region31: #{location_network_forward_batched.1} parent=27 // pred_region
        _
      $region32: #{location_network_forward_batched.1} parent=27 // pred_fallthru
        _
    $region28: #{location_network_forward_batched.1} parent=5 // pred_fallthru
      _
    %p192 = scmp.le.s32.totalorder 2, %s8
    // Predicated region
    $region33: #{location_network_forward_batched.1} parent=5 // pred_check
      %p193 = pneg %p192
    $region34: #{location_network_forward_batched.1} parent=5 // pred_check_branch
      %195 = sbr.rel (%p193) target = $region36
    $region35: #{location_network_forward_batched.1} parent=5 // pred_region
      %s196 = ssub.s32 %s8, 2
      // Predicated region
      $region37: #{location_network_forward_batched.1} parent=35 // pred_check
        %p197 = pneg %p84
      $region38: #{location_network_forward_batched.1} parent=35 // pred_check_branch
        %199 = sbr.rel (%p197) target = $region40
      $region39: #{location_network_forward_batched.1} parent=35 // pred_region
        %p200 = scmp.lt.s32.totalorder %s14, 7
        %s201 = scalar_select %p200, %s14, 7
        %s202 = scalar_lea.vmem %s2, %s201
      $region40: #{location_network_forward_batched.1} parent=35 // pred_fallthru
        _
    $region36: #{location_network_forward_batched.1} parent=5 // pred_fallthru
      _
  $region6: #{location_network_forward_batched.1} parent=0 // loop_footer
    %s12 = sadd.s32 1, %s8
  $region7: #{location_network_forward_batched.1} parent=0 // loop_footer_branch
    %7 = sbr.rel target = $region3
  $region8: #{location_network_forward_batched.1} parent=0 // loop_exit
    _

</llo_original>
